<compile_context>
chip_gen: v6e
topology: v6e:2x2x1
jax: 0.10.0
libtpu: 0.0.40
codegen_flags: <defaults>
</compile_context>

<pallas_src>
import jax
import jax.numpy as jnp
from jax.experimental import pallas as pl
from jax.experimental.pallas import tpu as pltpu

_LANE = 128        # lane width (last dim)
_ROW_ALIGN = 16    # row (sublane) alignment: 16 covers bf16 (16,128) and f32 (8,128)


def _round_up(n, m):
    return ((n + m - 1) // m) * m


def _pad2d(a, shape):
    out = jnp.zeros(shape, a.dtype)
    return out.at[: a.shape[0], : a.shape[1]].set(a)


def _mlp_kernel(x_ref, w1_ref, b1_ref, w2_ref, b2_ref, w3_ref, b3_ref, o_ref):
    # x:  [TB, inp_dim]   (bf16 HBM stream)
    # w1: [inp_dim, Hp], b1: [1, Hp]        (f32, pinned in VMEM)
    # w2: [Hp, Hp],      b2: [1, Hp]
    # w3: [Hp, Dp_out],  b3: [1, Dp_out]
    # o:  [TB, Dp_out]   (bf16 HBM stream)
    x = x_ref[...].astype(jnp.float32)

    h = jnp.dot(x, w1_ref[...], preferred_element_type=jnp.float32) + b1_ref[...]
    h = jnp.maximum(h, 0.0)

    h = jnp.dot(h, w2_ref[...], preferred_element_type=jnp.float32) + b2_ref[...]
    h = jnp.maximum(h, 0.0)

    h = jnp.dot(h, w3_ref[...], preferred_element_type=jnp.float32) + b3_ref[...]
    o_ref[...] = jax.nn.sigmoid(h).astype(o_ref.dtype)


def prepare_params(params, out_dim):
    """Pad weights/biases once (hoisted off the per-call hot path).

    Returns (w1p, b1p, w2p, b2p, w3p, b3p, inp_dim, dp_out). Only the hidden
    and output lane dims are padded to 128; the input feature dim stays
    unpadded so the activation stream is not inflated.
    """
    w1, b1, w2, b2, w3, b3 = params
    inp_dim, hidden_dim = w1.shape
    hp = _round_up(hidden_dim, _LANE)
    dp_out = _round_up(out_dim, _LANE)

    w1p = _pad2d(w1.astype(jnp.float32), (inp_dim, hp))
    w2p = _pad2d(w2.astype(jnp.float32), (hp, hp))
    w3p = _pad2d(w3.astype(jnp.float32), (hp, dp_out))
    b1p = _pad2d(b1.reshape(1, -1).astype(jnp.float32), (1, hp))
    b2p = _pad2d(b2.reshape(1, -1).astype(jnp.float32), (1, hp))
    b3p = _pad2d(b3.reshape(1, -1).astype(jnp.float32), (1, dp_out))
    return (w1p, b1p, w2p, b2p, w3p, b3p, inp_dim, dp_out)


def nn_forward_batched_padded(x, prepared, *, batch_tile=1024, core_parallel=False):
    """Hot-path entry: x [B, inp_dim] -> padded bf16 output [pb, dp_out].

    Consumers should slice rows [:B] / lanes [:out_dim] lazily (or fold the
    un-pad into downstream ops) to avoid an extra full-array HBM copy here.
    """
    w1p, b1p, w2p, b2p, w3p, b3p, inp_dim, dp_out = prepared
    B = x.shape[0]
    assert x.shape[1] == inp_dim, "input feature dim mismatch"

    # Batch tile: multiple of 16 rows, up to batch_tile (default 1024 -> each
    # step moves ~64 KiB in + 256 KiB out in bf16, amortizing per-step cost
    # while staying far under v5e's 16 MiB scoped VMEM even double-buffered).
    tb = min(_round_up(batch_tile, _ROW_ALIGN), _round_up(B, _ROW_ALIGN))
    pb = _round_up(B, tb)

    # bf16 HBM-facing activation stream; pad batch rows only if needed.
    xp = x.astype(jnp.bfloat16)
    if pb != B:
        xp = jnp.pad(xp, ((0, pb - B), (0, 0)))

    # Weights/biases: same block every grid step -> fetched once, pinned in VMEM.
    pinned = lambda arr: pl.BlockSpec(arr.shape, lambda i: (0, 0))

    if core_parallel:
        # v7x: shard batch tiles across the chip's two TensorCores.
        semantics = (pltpu.CORE_PARALLEL,)
    else:
        semantics = ("parallel",)

    y = pl.pallas_call(
        _mlp_kernel,
        out_shape=jax.ShapeDtypeStruct((pb, dp_out), jnp.bfloat16),
        grid=(pb // tb,),
        in_specs=[
            # Activations: tiled over batch, last dim = full (unpadded) inp_dim.
            pl.BlockSpec((tb, inp_dim), lambda i: (i, 0)),
            pinned(w1p), pinned(b1p),
            pinned(w2p), pinned(b2p),
            pinned(w3p), pinned(b3p),
        ],
        # Lane-dense 128-wide output tile -> unmasked vst.
        out_specs=pl.BlockSpec((tb, dp_out), lambda i: (i, 0)),
        compiler_params=pltpu.CompilerParams(dimension_semantics=semantics),
    )(xp, w1p, b1p, w2p, b2p, w3p, b3p)
    return y


def nn_forward_batched(x, prepared, out_dim, **kw):
    """Convenience wrapper returning the exact [B, out_dim] result.

    Note: the trailing slice is an extra HBM pass; prefer
    nn_forward_batched_padded on repeated-call hot paths.
    """
    y = nn_forward_batched_padded(x, prepared, **kw)
    return y[: x.shape[0], :out_dim]


def nn_forward(x, prepared, out_dim, **kw):
    """Module-equivalent forward: x is [inp_dim], returns [out, out, out] f32."""
    y = nn_forward_batched(x.reshape(1, -1), prepared, out_dim, **kw)
    out = int(round(out_dim ** (1.0 / 3.0)))
    return y[0].astype(jnp.float32).reshape(out, out, out)


def init_params(key, inp_dim, hidden_dim, out_dim):
    """Mimics torch.nn.Linear's U(-1/sqrt(fan_in), 1/sqrt(fan_in)) init.
    Weights stored as [in_features, out_features] (transposed vs. PyTorch)."""
    ks = jax.random.split(key, 6)

    def lin(kw, kb, fan_in, fan_out):
        bound = 1.0 / jnp.sqrt(fan_in)
        w = jax.random.uniform(kw, (fan_in, fan_out), jnp.float32, -bound, bound)
        b = jax.random.uniform(kb, (fan_out,), jnp.float32, -bound, bound)
        return w, b

    w1, b1 = lin(ks[0], ks[1], inp_dim, hidden_dim)
    w2, b2 = lin(ks[2], ks[3], hidden_dim, hidden_dim)
    w3, b3 = lin(ks[4], ks[5], hidden_dim, out_dim)
    return (w1, b1, w2, b2, w3, b3)


def _reference(x2d, params):
    """f32 reference (input pre-quantized to bf16 to match the kernel's stream)."""
    w1, b1, w2, b2, w3, b3 = params
    xq = x2d.astype(jnp.bfloat16).astype(jnp.float32)
    h = jnp.maximum(xq @ w1 + b1, 0.0)
    h = jnp.maximum(h @ w2 + b2, 0.0)
    return jax.nn.sigmoid(h @ w3 + b3)


if __name__ == "__main__":
    # Small shapes consistent with the module: out_dim must be a perfect cube.
    inp_dim, hidden_dim, out_dim = 32, 32, 64  # cbrt(64) = 4

    key = jax.random.PRNGKey(0)
    k_x, k_p, k_b = jax.random.split(key, 3)
    params = init_params(k_p, inp_dim, hidden_dim, out_dim)
    prepared = prepare_params(params, out_dim)   # pad once, reuse across calls

    # 1) Module-semantics single-sample forward: [inp_dim] -> [4, 4, 4].
    x = jax.random.normal(k_x, (inp_dim,), jnp.float32)
    y = nn_forward(x, prepared, out_dim)
    jax.block_until_ready(y)
    ref = _reference(x.reshape(1, -1), params)[0].reshape(4, 4, 4)
    assert y.shape == (4, 4, 4)
    # Output stream is bf16 -> loosened tolerance vs. the f32 reference.
    assert jnp.allclose(y, ref, atol=1.5e-2), "Pallas single-sample mismatch vs reference"

    # 2) Batched path (the performance-relevant shape): [B, inp_dim] -> [B, out_dim].
    B = 16
    xb = jax.random.normal(k_b, (B, inp_dim), jnp.float32)
    yb = nn_forward_batched(xb, prepared, out_dim)
    jax.block_until_ready(yb)
    refb = _reference(xb, params)
    assert yb.shape == (B, out_dim)
    assert jnp.allclose(yb.astype(jnp.float32), refb, atol=1.5e-2), \
        "Pallas batched mismatch vs reference"

    print("KERNEL_OK")
</pallas_src>

<mosaic_0001>
module attributes {stable_mosaic.version = 11 : i64} {
  func.func @_mlp_kernel(%arg0: i32, %arg1: memref<16x32xbf16, #tpu.memory_space<vmem>>, %arg2: memref<32x128xf32, #tpu.memory_space<vmem>>, %arg3: memref<1x128xf32, #tpu.memory_space<vmem>>, %arg4: memref<128x128xf32, #tpu.memory_space<vmem>>, %arg5: memref<1x128xf32, #tpu.memory_space<vmem>>, %arg6: memref<128x128xf32, #tpu.memory_space<vmem>>, %arg7: memref<1x128xf32, #tpu.memory_space<vmem>>, %arg8: memref<16x128xbf16, #tpu.memory_space<vmem>>) attributes {dimension_semantics = [#tpu.dimension_semantics<parallel>], iteration_bounds = array<i64: 1>, scalar_prefetch = 0 : i64, scratch_operands = 0 : i64, tpu.core_type = #tpu.core_type<tc>, window_params = [{transform_indices = @transform_0, window_bounds = array<i64: 16, 32>}, {pipeline_mode = #tpu.pipeline_mode<synchronous>, transform_indices = @transform_1, window_bounds = array<i64: 32, 128>}, {pipeline_mode = #tpu.pipeline_mode<synchronous>, transform_indices = @transform_2, window_bounds = array<i64: 1, 128>}, {pipeline_mode = #tpu.pipeline_mode<synchronous>, transform_indices = @transform_3, window_bounds = array<i64: 128, 128>}, {pipeline_mode = #tpu.pipeline_mode<synchronous>, transform_indices = @transform_4, window_bounds = array<i64: 1, 128>}, {pipeline_mode = #tpu.pipeline_mode<synchronous>, transform_indices = @transform_5, window_bounds = array<i64: 128, 128>}, {pipeline_mode = #tpu.pipeline_mode<synchronous>, transform_indices = @transform_6, window_bounds = array<i64: 1, 128>}, {transform_indices = @transform_7, window_bounds = array<i64: 16, 128>}]} {
    %c0 = arith.constant 0 : index
    %c0_0 = arith.constant 0 : index
    %0 = vector.load %arg1[%c0, %c0_0] : memref<16x32xbf16, #tpu.memory_space<vmem>>, vector<16x32xbf16>
    %1 = arith.extf %0 : vector<16x32xbf16> to vector<16x32xf32>
    %c0_1 = arith.constant 0 : index
    %c0_2 = arith.constant 0 : index
    %2 = vector.load %arg2[%c0_1, %c0_2] : memref<32x128xf32, #tpu.memory_space<vmem>>, vector<32x128xf32>
    %cst = arith.constant dense<0.000000e+00> : vector<16x128xf32>
    %3 = tpu.matmul %1, %2, %cst {dimension_numbers = #tpu.dot_dimension_numbers<[1], [0], [0], [1], [0, 0, 1, 1], [], []>} : vector<16x32xf32>, vector<32x128xf32>, vector<16x128xf32> -> vector<16x128xf32>
    %c0_3 = arith.constant 0 : index
    %c0_4 = arith.constant 0 : index
    %4 = vector.load %arg3[%c0_3, %c0_4] : memref<1x128xf32, #tpu.memory_space<vmem>>, vector<1x128xf32>
    %5 = vector.broadcast %4 : vector<1x128xf32> to vector<16x128xf32>
    %6 = arith.addf %3, %5 : vector<16x128xf32>
    %cst_5 = arith.constant 0.000000e+00 : f32
    %7 = vector.broadcast %cst_5 : f32 to vector<16x128xf32>
    %8 = arith.maximumf %6, %7 : vector<16x128xf32>
    %c0_6 = arith.constant 0 : index
    %c0_7 = arith.constant 0 : index
    %9 = vector.load %arg4[%c0_6, %c0_7] : memref<128x128xf32, #tpu.memory_space<vmem>>, vector<128x128xf32>
    %cst_8 = arith.constant dense<0.000000e+00> : vector<16x128xf32>
    %10 = tpu.matmul %8, %9, %cst_8 {dimension_numbers = #tpu.dot_dimension_numbers<[1], [0], [0], [1], [0, 0, 1, 1], [], []>} : vector<16x128xf32>, vector<128x128xf32>, vector<16x128xf32> -> vector<16x128xf32>
    %c0_9 = arith.constant 0 : index
    %c0_10 = arith.constant 0 : index
    %11 = vector.load %arg5[%c0_9, %c0_10] : memref<1x128xf32, #tpu.memory_space<vmem>>, vector<1x128xf32>
    %12 = vector.broadcast %11 : vector<1x128xf32> to vector<16x128xf32>
    %13 = arith.addf %10, %12 : vector<16x128xf32>
    %cst_11 = arith.constant 0.000000e+00 : f32
    %14 = vector.broadcast %cst_11 : f32 to vector<16x128xf32>
    %15 = arith.maximumf %13, %14 : vector<16x128xf32>
    %c0_12 = arith.constant 0 : index
    %c0_13 = arith.constant 0 : index
    %16 = vector.load %arg6[%c0_12, %c0_13] : memref<128x128xf32, #tpu.memory_space<vmem>>, vector<128x128xf32>
    %cst_14 = arith.constant dense<0.000000e+00> : vector<16x128xf32>
    %17 = tpu.matmul %15, %16, %cst_14 {dimension_numbers = #tpu.dot_dimension_numbers<[1], [0], [0], [1], [0, 0, 1, 1], [], []>} : vector<16x128xf32>, vector<128x128xf32>, vector<16x128xf32> -> vector<16x128xf32>
    %c0_15 = arith.constant 0 : index
    %c0_16 = arith.constant 0 : index
    %18 = vector.load %arg7[%c0_15, %c0_16] : memref<1x128xf32, #tpu.memory_space<vmem>>, vector<1x128xf32>
    %19 = vector.broadcast %18 : vector<1x128xf32> to vector<16x128xf32>
    %20 = arith.addf %17, %19 : vector<16x128xf32>
    %21 = arith.negf %20 : vector<16x128xf32>
    %22 = math.exp %21 : vector<16x128xf32>
    %cst_17 = arith.constant 1.000000e+00 : f32
    %23 = vector.broadcast %cst_17 : f32 to vector<16x128xf32>
    %24 = arith.addf %23, %22 : vector<16x128xf32>
    %25 = arith.divf %23, %24 : vector<16x128xf32>
    %26 = arith.truncf %25 : vector<16x128xf32> to vector<16x128xbf16>
    %c0_18 = arith.constant 0 : index
    %c0_19 = arith.constant 0 : index
    %27 = vector.load %arg8[%c0_18, %c0_19] : memref<16x128xbf16, #tpu.memory_space<vmem>>, vector<16x128xbf16>
    tpu.vector_store %arg8[%c0_18, %c0_19], %26 {strides = array<i32>} : memref<16x128xbf16, #tpu.memory_space<vmem>>, vector<16x128xbf16>,
    return
  }
  func.func @transform_0(%arg0: i32) -> (i32, i32) {
    %c0_i32 = arith.constant 0 : i32
    %c0_i32_0 = arith.constant 0 : i32
    return %arg0, %c0_i32 : i32, i32
  }
  func.func @transform_1(%arg0: i32) -> (i32, i32) {
    %c0_i32 = arith.constant 0 : i32
    %c0_i32_0 = arith.constant 0 : i32
    %c0_i32_1 = arith.constant 0 : i32
    return %c0_i32, %c0_i32_0 : i32, i32
  }
  func.func @transform_2(%arg0: i32) -> (i32, i32) {
    %c0_i32 = arith.constant 0 : i32
    %c0_i32_0 = arith.constant 0 : i32
    %c0_i32_1 = arith.constant 0 : i32
    return %c0_i32, %c0_i32_0 : i32, i32
  }
  func.func @transform_3(%arg0: i32) -> (i32, i32) {
    %c0_i32 = arith.constant 0 : i32
    %c0_i32_0 = arith.constant 0 : i32
    %c0_i32_1 = arith.constant 0 : i32
    return %c0_i32, %c0_i32_0 : i32, i32
  }
  func.func @transform_4(%arg0: i32) -> (i32, i32) {
    %c0_i32 = arith.constant 0 : i32
    %c0_i32_0 = arith.constant 0 : i32
    %c0_i32_1 = arith.constant 0 : i32
    return %c0_i32, %c0_i32_0 : i32, i32
  }
  func.func @transform_5(%arg0: i32) -> (i32, i32) {
    %c0_i32 = arith.constant 0 : i32
    %c0_i32_0 = arith.constant 0 : i32
    %c0_i32_1 = arith.constant 0 : i32
    return %c0_i32, %c0_i32_0 : i32, i32
  }
  func.func @transform_6(%arg0: i32) -> (i32, i32) {
    %c0_i32 = arith.constant 0 : i32
    %c0_i32_0 = arith.constant 0 : i32
    %c0_i32_1 = arith.constant 0 : i32
    return %c0_i32, %c0_i32_0 : i32, i32
  }
  func.func @transform_7(%arg0: i32) -> (i32, i32) {
    %c0_i32 = arith.constant 0 : i32
    %c0_i32_0 = arith.constant 0 : i32
    return %arg0, %c0_i32 : i32, i32
  }
}

</mosaic_0001>

<llo_original>
// kernel: tpu_custom_call.1
$region0: #{tpu_custom_call.1}
  #allocation0 [shape = 'u32[]', space=smem, size = 0x4, offset = 0x4, fixed_abs, tag = 'smem constant byte address 0x4 - core index']
  #allocation1 [shape = 'u32[144,128]{1,0:T(1,128)}', space=vmem, size = 0x12000, scoped, tag = 'internal scratch']
  %s0 = inlined_call_operand.hbm [shape: bf16[16,32], index: 0, kind: input, shape index: {}]
  %s1 = inlined_call_operand.hbm [shape: f32[32,128], index: 1, kind: input, shape index: {}]
  %s2 = inlined_call_operand.vmem [shape: f32[1,128], index: 2, kind: input, shape index: {}]
  %s3 = inlined_call_operand.hbm [shape: f32[128,128], index: 3, kind: input, shape index: {}]
  %s4 = inlined_call_operand.vmem [shape: f32[1,128], index: 4, kind: input, shape index: {}]
  %s5 = inlined_call_operand.hbm [shape: f32[128,128], index: 5, kind: input, shape index: {}]
  %s6 = inlined_call_operand.vmem [shape: f32[1,128], index: 6, kind: input, shape index: {}]
  %s7 = inlined_call_operand.hbm [shape: bf16[16,128], index: 7, kind: output, shape index: {}]
  %s8 = sld [smem:[#allocation0]]
  $region54: #{tpu_custom_call.1} parent=0
    _
  %s10 = ssub.s32 1, %s8
  %s11 = scalar_select 0, %s10, %s8
  $region1: #{tpu_custom_call.1} parent=0
    #allocation2 [shape = 'u8[4096]{0}', space=vmem, size = 0x1000, scoped, tag = 'input window, operand 0, single buffered']
    #allocation3 [shape = 's32[1]{0}', space=sflag, size = 0x4, scoped, tag = 'scoped memory for tpu_custom_call.1']
    #allocation4 [shape = 's32[1]{0}', space=sflag, size = 0x4, scoped, tag = 'scoped memory for tpu_custom_call.1']
    #allocation5 [shape = 'u8[16384]{0}', space=vmem, size = 0x4000, scoped, tag = 'input window, operand 1, single buffered']
    #allocation6 [shape = 's32[1]{0}', space=sflag, size = 0x4, scoped, tag = 'scoped memory for tpu_custom_call.1']
    #allocation7 [shape = 'u8[65536]{0}', space=vmem, size = 0x10000, scoped, tag = 'input window, operand 3, single buffered']
    #allocation8 [shape = 'u8[65536]{0}', space=vmem, size = 0x10000, scoped, tag = 'input window, operand 5, single buffered']
    #allocation9 [shape = 's32[1]{0}', space=sflag, size = 0x4, scoped, tag = 'scoped memory for tpu_custom_call.1']
    #allocation10 [shape = 'u8[4096]{0}', space=vmem, size = 0x1000, scoped, tag = 'output window, operand 0, single buffered']
    %12 = vsyncpa [#allocation3], 0
    %13 = vsyncpa [#allocation6], 0
    %14 = vsyncpa [#allocation9], 0
    %15 = vsyncpa [#allocation4], 0
    // Predicated region
    $region2: #{tpu_custom_call.1} parent=1 // pred_check
      _
    $region3: #{tpu_custom_call.1} parent=1 // pred_check_branch
      %17 = sbr.rel (0) target = $region5
    $region4: #{tpu_custom_call.1} parent=1 // pred_region
      %s19 = ssub.s32 128, 128
      %20 = vsyncadd [#allocation3], %s19
      %s21 = sshll.u32 [#allocation2], 4
      %s22 = int_to_ptr.vmem [resolvable:$true] %s21
      %27 = dma.hbm_to_vmem [thread:$0]  %s0, 128, %s22, [#allocation3], 64, 64, 4
    $region5: #{tpu_custom_call.1} parent=1 // pred_fallthru
      _
    // Predicated region
    $region6: #{tpu_custom_call.1} parent=1 // pred_check
      _
    $region7: #{tpu_custom_call.1} parent=1 // pred_check_branch
      %29 = sbr.rel (0) target = $region9
    $region8: #{tpu_custom_call.1} parent=1 // pred_region
      %s31 = ssub.s32 512, 512
      %32 = vsyncadd [#allocation6], %s31
      %s33 = sshll.u32 [#allocation5], 4
      %s34 = int_to_ptr.vmem [resolvable:$true] %s33
      %39 = dma.hbm_to_vmem [thread:$0]  %s1, 512, %s34, [#allocation6], 128, 128, 8
    $region9: #{tpu_custom_call.1} parent=1 // pred_fallthru
      _
    // Predicated region
    $region10: #{tpu_custom_call.1} parent=1 // pred_check
      _
    $region11: #{tpu_custom_call.1} parent=1 // pred_check_branch
      %41 = sbr.rel (0) target = $region13
    $region12: #{tpu_custom_call.1} parent=1 // pred_region
      _
    $region13: #{tpu_custom_call.1} parent=1 // pred_fallthru
      _
    // Predicated region
    $region14: #{tpu_custom_call.1} parent=1 // pred_check
      _
    $region15: #{tpu_custom_call.1} parent=1 // pred_check_branch
      %43 = sbr.rel (0) target = $region17
    $region16: #{tpu_custom_call.1} parent=1 // pred_region
      %s45 = ssub.s32 2048, 2048
      %46 = vsyncadd [#allocation6], %s45
      %s47 = sshll.u32 [#allocation7], 4
      %s48 = int_to_ptr.vmem [resolvable:$true] %s47
      %53 = dma.hbm_to_vmem [thread:$0]  %s3, 2048, %s48, [#allocation6], 128, 128, 8
    $region17: #{tpu_custom_call.1} parent=1 // pred_fallthru
      _
    // Predicated region
    $region18: #{tpu_custom_call.1} parent=1 // pred_check
      _
    $region19: #{tpu_custom_call.1} parent=1 // pred_check_branch
      %55 = sbr.rel (0) target = $region21
    $region20: #{tpu_custom_call.1} parent=1 // pred_region
      _
    $region21: #{tpu_custom_call.1} parent=1 // pred_fallthru
      _
    // Predicated region
    $region22: #{tpu_custom_call.1} parent=1 // pred_check
      _
    $region23: #{tpu_custom_call.1} parent=1 // pred_check_branch
      %57 = sbr.rel (0) target = $region25
    $region24: #{tpu_custom_call.1} parent=1 // pred_region
      %s59 = ssub.s32 2048, 2048
      %60 = vsyncadd [#allocation9], %s59
      %s61 = sshll.u32 [#allocation8], 4
      %s62 = int_to_ptr.vmem [resolvable:$true] %s61
      %67 = dma.hbm_to_vmem [thread:$0]  %s5, 2048, %s62, [#allocation9], 128, 128, 8
    $region25: #{tpu_custom_call.1} parent=1 // pred_fallthru
      _
    // Predicated region
    $region26: #{tpu_custom_call.1} parent=1 // pred_check
      _
    $region27: #{tpu_custom_call.1} parent=1 // pred_check_branch
      %69 = sbr.rel (0) target = $region29
    $region28: #{tpu_custom_call.1} parent=1 // pred_region
      _
    $region29: #{tpu_custom_call.1} parent=1 // pred_fallthru
      _
    // Predicated region
    $region30: #{tpu_custom_call.1} parent=1 // pred_check
      _
    $region31: #{tpu_custom_call.1} parent=1 // pred_check_branch
      %71 = sbr.rel (0) target = $region33
    $region32: #{tpu_custom_call.1} parent=1 // pred_region
      %72 = dma.done [#allocation3], 128
    $region33: #{tpu_custom_call.1} parent=1 // pred_fallthru
      _
    // Predicated region
    $region34: #{tpu_custom_call.1} parent=1 // pred_check
      _
    $region35: #{tpu_custom_call.1} parent=1 // pred_check_branch
      %74 = sbr.rel (0) target = $region37
    $region36: #{tpu_custom_call.1} parent=1 // pred_region
      %75 = dma.done [#allocation6], 512
    $region37: #{tpu_custom_call.1} parent=1 // pred_fallthru
      _
    // Predicated region
    $region38: #{tpu_custom_call.1} parent=1 // pred_check
      _
    $region39: #{tpu_custom_call.1} parent=1 // pred_check_branch
      %77 = sbr.rel (0) target = $region41
    $region40: #{tpu_custom_call.1} parent=1 // pred_region
      %78 = dma.done [#allocation6], 2048
    $region41: #{tpu_custom_call.1} parent=1 // pred_fallthru
      _
    // Predicated region
    $region42: #{tpu_custom_call.1} parent=1 // pred_check
      _
    $region43: #{tpu_custom_call.1} parent=1 // pred_check_branch
      %80 = sbr.rel (0) target = $region45
    $region44: #{tpu_custom_call.1} parent=1 // pred_region
      %81 = dma.done [#allocation9], 2048
    $region45: #{tpu_custom_call.1} parent=1 // pred_fallthru
      _
    %v82 = vld [vmem:[#allocation2] sm:$0xf]
    %v83 = vld [vmem:[#allocation2 + $0x4] sm:$0xf]
    %v84 = vunpack.c.l.bf16 %v82
    %v85 = vunpack.c.l.bf16 %v83
    %v86 = vld [vmem:[#allocation5] sm:$0xff]
    %v87 = vld [vmem:[#allocation5 + $0x8] sm:$0xff]
    %v88 = vld [vmem:[#allocation5 + $0x10] sm:$0xff]
    %v89 = vld [vmem:[#allocation5 + $0x18] sm:$0xff]
    %v90 = vld [vmem:[%s2] sm:$0x1]
    %v92 = vlaneseq
    %v93 = vshrl.u32 %v92, 7
    %v94 = vsub.s32 0, %v93
    %v95 = vrot.slane %v90, %v94
    %vm97 = vcmask 261120
    %v99 = vsel %vm97, %v84, 0
    %v102 = vsel %vm97, %v85, 0
    %104 = vmatprep.subr.mxu0 0.0
    %105 = vmatpush1.msra.mxu0 0.0
    %106 = vmatprep.subr.mxu0 0.0
    %107 = vmatpush1.msra.mxu0 0.0
    %108 = vmatprep.subr.mxu0 0.0
    %109 = vmatpush1.msra.mxu0 0.0
    %110 = vmatprep.subr.mxu0 0.0
    %111 = vmatpush1.msra.mxu0 0.0
    %112 = vmatprep.subr.mxu0 0.0
    %113 = vmatpush1.msra.mxu0 0.0
    %114 = vmatprep.subr.mxu0 0.0
    %115 = vmatpush1.msra.mxu0 0.0
    %116 = vmatprep.subr.mxu0 0.0
    %117 = vmatpush1.msra.mxu0 0.0
    %118 = vmatprep.subr.mxu0 0.0
    %119 = vmatpush1.msra.mxu0 0.0
    %120 = vmatprep.subr.mxu0 0.0
    %121 = vmatpush1.msra.mxu0 0.0
    %122 = vmatprep.subr.mxu0 0.0
    %123 = vmatpush1.msra.mxu0 0.0
    %124 = vmatprep.subr.mxu0 0.0
    %125 = vmatpush1.msra.mxu0 0.0
    %126 = vmatprep.subr.mxu0 0.0
    %127 = vmatpush1.msra.mxu0 0.0
    %128 = vmatprep.subr.mxu0 0.0
    %129 = vmatpush1.msra.mxu0 %v89
    %130 = vmatprep.subr.mxu0 0.0
    %131 = vmatpush1.msra.mxu0 %v88
    %132 = vmatprep.subr.mxu0 0.0
    %133 = vmatpush1.msra.mxu0 %v87
    %134 = vmatprep.subr.mxu0 0.0
    %135 = vmatpush1.msra.mxu0 %v86
    %136 = vmatprep.subr.mxu0 0.0
    %137 = vmatpush2.msra.mxu0 0.0
    %138 = vmatprep.subr.mxu0 0.0
    %139 = vmatpush2.msra.mxu0 0.0
    %140 = vmatprep.subr.mxu0 0.0
    %141 = vmatpush2.msra.mxu0 0.0
    %142 = vmatprep.subr.mxu0 0.0
    %143 = vmatpush2.msra.mxu0 0.0
    %144 = vmatprep.subr.mxu0 0.0
    %145 = vmatpush2.msra.mxu0 0.0
    %146 = vmatprep.subr.mxu0 0.0
    %147 = vmatpush2.msra.mxu0 0.0
    %148 = vmatprep.subr.mxu0 0.0
    %149 = vmatpush2.msra.mxu0 0.0
    %150 = vmatprep.subr.mxu0 0.0
    %151 = vmatpush2.msra.mxu0 0.0
    %152 = vmatprep.subr.mxu0 0.0
    %153 = vmatpush2.msra.mxu0 0.0
    %154 = vmatprep.subr.mxu0 0.0
    %155 = vmatpush2.msra.mxu0 0.0
    %156 = vmatprep.subr.mxu0 0.0
    %157 = vmatpush2.msra.mxu0 0.0
    %158 = vmatprep.subr.mxu0 0.0
    %159 = vmatpush2.msra.mxu0 0.0
    %160 = vmatprep.subr.mxu0 0.0
    %161 = vmatpush2.msra.mxu0 0.0
    %162 = vmatprep.subr.mxu0 0.0
    %163 = vmatpush2.msra.mxu0 0.0
    %164 = vmatprep.subr.mxu0 0.0
    %165 = vmatpush2.msra.mxu0 0.0
    %166 = vmatprep.subr.mxu0 0.0
    %167 = vmatpush2.msra.mxu0 0.0
    %168 = vmatprep.mubr.f32.mxu0 0.0
    %169 = vmatmul.mubr.f32.gmra.mxu0 %v99
    %v170 = vpop.f32.mrf.mxu0
    %v171 = vadd.f32 %v95, %v170
    %v172 = vpop.f32.mrf.mxu0
    %173 = vmatprep.mubr.f32.mxu0 0.0
    %174 = vmatmul.mubr.f32.gmra.mxu0 %v102
    %v175 = vpop.f32.mrf.mxu0
    %v176 = vadd.f32 %v95, %v175
    %v177 = vpop.f32.mrf.mxu0
    %178 = vdwg.mxu0
    %v179 = vmax.f32 %v171, 0.0
    %v180 = vmax.f32 %v176, 0.0
    %v181 = vld [vmem:[#allocation7] sm:$0xff]
    %v182 = vld [vmem:[#allocation7 + $0x8] sm:$0xff]
    %v183 = vld [vmem:[#allocation7 + $0x10] sm:$0xff]
    %v184 = vld [vmem:[#allocation7 + $0x18] sm:$0xff]
    %v185 = vld [vmem:[#allocation7 + $0x20] sm:$0xff]
    %v186 = vld [vmem:[#allocation7 + $0x28] sm:$0xff]
    %v187 = vld [vmem:[#allocation7 + $0x30] sm:$0xff]
    %v188 = vld [vmem:[#allocation7 + $0x38] sm:$0xff]
    %v189 = vld [vmem:[#allocation7 + $0x40] sm:$0xff]
    %v190 = vld [vmem:[#allocation7 + $0x48] sm:$0xff]
    %v191 = vld [vmem:[#allocation7 + $0x50] sm:$0xff]
    %v192 = vld [vmem:[#allocation7 + $0x58] sm:$0xff]
    %v193 = vld [vmem:[#allocation7 + $0x60] sm:$0xff]
    %v194 = vld [vmem:[#allocation7 + $0x68] sm:$0xff]
    %v195 = vld [vmem:[#allocation7 + $0x70] sm:$0xff]
    %v196 = vld [vmem:[#allocation7 + $0x78] sm:$0xff]
    %v197 = vld [vmem:[%s4] sm:$0x1]
    %v199 = vlaneseq
    %v200 = vshrl.u32 %v199, 7
    %v201 = vsub.s32 0, %v200
    %v202 = vrot.slane %v197, %v201
    %204 = vmatprep.subr.mxu0 0.0
    %205 = vmatpush1.msra.mxu0 %v196
    %206 = vmatprep.subr.mxu0 0.0
    %207 = vmatpush1.msra.mxu0 %v195
    %208 = vmatprep.subr.mxu0 0.0
    %209 = vmatpush1.msra.mxu0 %v194
    %210 = vmatprep.subr.mxu0 0.0
    %211 = vmatpush1.msra.mxu0 %v193
    %212 = vmatprep.subr.mxu0 0.0
    %213 = vmatpush1.msra.mxu0 %v192
    %214 = vmatprep.subr.mxu0 0.0
    %215 = vmatpush1.msra.mxu0 %v191
    %216 = vmatprep.subr.mxu0 0.0
    %217 = vmatpush1.msra.mxu0 %v190
    %218 = vmatprep.subr.mxu0 0.0
    %219 = vmatpush1.msra.mxu0 %v189
    %220 = vmatprep.subr.mxu0 0.0
    %221 = vmatpush1.msra.mxu0 %v188
    %222 = vmatprep.subr.mxu0 0.0
    %223 = vmatpush1.msra.mxu0 %v187
    %224 = vmatprep.subr.mxu0 0.0
    %225 = vmatpush1.msra.mxu0 %v186
    %226 = vmatprep.subr.mxu0 0.0
    %227 = vmatpush1.msra.mxu0 %v185
    %228 = vmatprep.subr.mxu0 0.0
    %229 = vmatpush1.msra.mxu0 %v184
    %230 = vmatprep.subr.mxu0 0.0
    %231 = vmatpush1.msra.mxu0 %v183
    %232 = vmatprep.subr.mxu0 0.0
    %233 = vmatpush1.msra.mxu0 %v182
    %234 = vmatprep.subr.mxu0 0.0
    %235 = vmatpush1.msra.mxu0 %v181
    %236 = vmatprep.subr.mxu0 0.0
    %237 = vmatpush2.msra.mxu0 0.0
    %238 = vmatprep.subr.mxu0 0.0
    %239 = vmatpush2.msra.mxu0 0.0
    %240 = vmatprep.subr.mxu0 0.0
    %241 = vmatpush2.msra.mxu0 0.0
    %242 = vmatprep.subr.mxu0 0.0
    %243 = vmatpush2.msra.mxu0 0.0
    %244 = vmatprep.subr.mxu0 0.0
    %245 = vmatpush2.msra.mxu0 0.0
    %246 = vmatprep.subr.mxu0 0.0
    %247 = vmatpush2.msra.mxu0 0.0
    %248 = vmatprep.subr.mxu0 0.0
    %249 = vmatpush2.msra.mxu0 0.0
    %250 = vmatprep.subr.mxu0 0.0
    %251 = vmatpush2.msra.mxu0 0.0
    %252 = vmatprep.subr.mxu0 0.0
    %253 = vmatpush2.msra.mxu0 0.0
    %254 = vmatprep.subr.mxu0 0.0
    %255 = vmatpush2.msra.mxu0 0.0
    %256 = vmatprep.subr.mxu0 0.0
    %257 = vmatpush2.msra.mxu0 0.0
    %258 = vmatprep.subr.mxu0 0.0
    %259 = vmatpush2.msra.mxu0 0.0
    %260 = vmatprep.subr.mxu0 0.0
    %261 = vmatpush2.msra.mxu0 0.0
    %262 = vmatprep.subr.mxu0 0.0
    %263 = vmatpush2.msra.mxu0 0.0
    %264 = vmatprep.subr.mxu0 0.0
    %265 = vmatpush2.msra.mxu0 0.0
    %266 = vmatprep.subr.mxu0 0.0
    %267 = vmatpush2.msra.mxu0 0.0
    %268 = vmatprep.mubr.f32.mxu0 0.0
    %269 = vmatmul.mubr.f32.gmra.mxu0 %v179
    %v270 = vpop.f32.mrf.mxu0
    %v271 = vadd.f32 %v202, %v270
    %v272 = vpop.f32.mrf.mxu0
    %273 = vmatprep.mubr.f32.mxu0 0.0
    %274 = vmatmul.mubr.f32.gmra.mxu0 %v180
    %v275 = vpop.f32.mrf.mxu0
    %v276 = vadd.f32 %v202, %v275
    %v277 = vpop.f32.mrf.mxu0
    %278 = vdwg.mxu0
    %v279 = vmax.f32 %v271, 0.0
    %v280 = vmax.f32 %v276, 0.0
    %v281 = vld [vmem:[#allocation8] sm:$0xff]
    %v282 = vld [vmem:[#allocation8 + $0x8] sm:$0xff]
    %v283 = vld [vmem:[#allocation8 + $0x10] sm:$0xff]
    %v284 = vld [vmem:[#allocation8 + $0x18] sm:$0xff]
    %v285 = vld [vmem:[#allocation8 + $0x20] sm:$0xff]
    %v286 = vld [vmem:[#allocation8 + $0x28] sm:$0xff]
    %v287 = vld [vmem:[#allocation8 + $0x30] sm:$0xff]
    %v288 = vld [vmem:[#allocation8 + $0x38] sm:$0xff]
    %v289 = vld [vmem:[#allocation8 + $0x40] sm:$0xff]
    %v290 = vld [vmem:[#allocation8 + $0x48] sm:$0xff]
    %v291 = vld [vmem:[#allocation8 + $0x50] sm:$0xff]
    %v292 = vld [vmem:[#allocation8 + $0x58] sm:$0xff]
    %v293 = vld [vmem:[#allocation8 + $0x60] sm:$0xff]
    %v294 = vld [vmem:[#allocation8 + $0x68] sm:$0xff]
    %v295 = vld [vmem:[#allocation8 + $0x70] sm:$0xff]
    %v296 = vld [vmem:[#allocation8 + $0x78] sm:$0xff]
    %v297 = vld [vmem:[%s6] sm:$0x1]
    %v299 = vlaneseq
    %v300 = vshrl.u32 %v299, 7
    %v301 = vsub.s32 0, %v300
    %v302 = vrot.slane %v297, %v301
    %304 = vmatprep.subr.mxu0 0.0
    %305 = vmatpush1.msra.mxu0 %v296
    %306 = vmatprep.subr.mxu0 0.0
    %307 = vmatpush1.msra.mxu0 %v295
    %308 = vmatprep.subr.mxu0 0.0
    %309 = vmatpush1.msra.mxu0 %v294
    %310 = vmatprep.subr.mxu0 0.0
    %311 = vmatpush1.msra.mxu0 %v293
    %312 = vmatprep.subr.mxu0 0.0
    %313 = vmatpush1.msra.mxu0 %v292
    %314 = vmatprep.subr.mxu0 0.0
    %315 = vmatpush1.msra.mxu0 %v291
    %316 = vmatprep.subr.mxu0 0.0
    %317 = vmatpush1.msra.mxu0 %v290
    %318 = vmatprep.subr.mxu0 0.0
    %319 = vmatpush1.msra.mxu0 %v289
    %320 = vmatprep.subr.mxu0 0.0
    %321 = vmatpush1.msra.mxu0 %v288
    %322 = vmatprep.subr.mxu0 0.0
    %323 = vmatpush1.msra.mxu0 %v287
    %324 = vmatprep.subr.mxu0 0.0
    %325 = vmatpush1.msra.mxu0 %v286
    %326 = vmatprep.subr.mxu0 0.0
    %327 = vmatpush1.msra.mxu0 %v285
    %328 = vmatprep.subr.mxu0 0.0
    %329 = vmatpush1.msra.mxu0 %v284
    %330 = vmatprep.subr.mxu0 0.0
    %331 = vmatpush1.msra.mxu0 %v283
    %332 = vmatprep.subr.mxu0 0.0
    %333 = vmatpush1.msra.mxu0 %v282
    %334 = vmatprep.subr.mxu0 0.0
    %335 = vmatpush1.msra.mxu0 %v281
    %336 = vmatprep.subr.mxu0 0.0
    %337 = vmatpush2.msra.mxu0 0.0
    %338 = vmatprep.subr.mxu0 0.0
    %339 = vmatpush2.msra.mxu0 0.0
    %340 = vmatprep.subr.mxu0 0.0
    %341 = vmatpush2.msra.mxu0 0.0
    %342 = vmatprep.subr.mxu0 0.0
    %343 = vmatpush2.msra.mxu0 0.0
    %344 = vmatprep.subr.mxu0 0.0
    %345 = vmatpush2.msra.mxu0 0.0
    %346 = vmatprep.subr.mxu0 0.0
    %347 = vmatpush2.msra.mxu0 0.0
    %348 = vmatprep.subr.mxu0 0.0
    %349 = vmatpush2.msra.mxu0 0.0
    %350 = vmatprep.subr.mxu0 0.0
    %351 = vmatpush2.msra.mxu0 0.0
    %352 = vmatprep.subr.mxu0 0.0
    %353 = vmatpush2.msra.mxu0 0.0
    %354 = vmatprep.subr.mxu0 0.0
    %355 = vmatpush2.msra.mxu0 0.0
    %356 = vmatprep.subr.mxu0 0.0
    %357 = vmatpush2.msra.mxu0 0.0
    %358 = vmatprep.subr.mxu0 0.0
    %359 = vmatpush2.msra.mxu0 0.0
    %360 = vmatprep.subr.mxu0 0.0
    %361 = vmatpush2.msra.mxu0 0.0
    %362 = vmatprep.subr.mxu0 0.0
    %363 = vmatpush2.msra.mxu0 0.0
    %364 = vmatprep.subr.mxu0 0.0
    %365 = vmatpush2.msra.mxu0 0.0
    %366 = vmatprep.subr.mxu0 0.0
    %367 = vmatpush2.msra.mxu0 0.0
    %368 = vmatprep.mubr.f32.mxu0 0.0
    %369 = vmatmul.mubr.f32.gmra.mxu0 %v279
    %v370 = vpop.f32.mrf.mxu0
    %v371 = vadd.f32 %v302, %v370
    %v372 = vpop.f32.mrf.mxu0
    %373 = vmatprep.mubr.f32.mxu0 0.0
    %374 = vmatmul.mubr.f32.gmra.mxu0 %v280
    %v375 = vpop.f32.mrf.mxu0
    %v376 = vadd.f32 %v302, %v375
    %v377 = vpop.f32.mrf.mxu0
    %378 = vdwg.mxu0
    %v379 = vxor.u32 %v371, 2147483648
    %v380 = vxor.u32 %v376, 2147483648
    %v381 = vmul.f32 %v379, 1.442695
    %v382 = vpow.pop %v381
    %v383 = vmul.f32 %v380, 1.442695
    %v384 = vpow.pop %v383
    %v385 = vadd.f32 %v382, 1.0
    %v386 = vadd.f32 %v384, 1.0
    %v387 = vrcp.pop %v385
    %v388 = vmul.f32 1.0, %v387
    %v389 = vrcp.pop %v386
    %v390 = vmul.f32 1.0, %v389
    %v391 = vpack.c.bf16 %v390, %v388
    %v393 = vunpack.c.l.b16 %v391
    %v394 = vunpack.c.h.b16 %v391
    %v395 = vpack.c.b16 %v393, %v393
    %v396 = vpack.c.b16 %v394, %v394
    %399 = vst [vmem:[#allocation10] sm:$0xf] %v395
    %400 = vst [vmem:[#allocation10 + $0x4] sm:$0xf] %v396
    // Predicated region
    $region46: #{tpu_custom_call.1} parent=1 // pred_check
      _
    $region47: #{tpu_custom_call.1} parent=1 // pred_check_branch
      %402 = sbr.rel (0) target = $region49
    $region48: #{tpu_custom_call.1} parent=1 // pred_region
      %s404 = ssub.s32 128, 128
      %405 = vsyncadd [#allocation4], %s404
      %s406 = sshll.u32 [#allocation10], 4
      %s407 = int_to_ptr.vmem [resolvable:$true] %s406
      %412 = dma.vmem_to_hbm [thread:$0]  %s407, 128, %s7, [#allocation4], 64, 64, 4
    $region49: #{tpu_custom_call.1} parent=1 // pred_fallthru
      _
    // Predicated region
    $region50: #{tpu_custom_call.1} parent=1 // pred_check
      _
    $region51: #{tpu_custom_call.1} parent=1 // pred_check_branch
      %414 = sbr.rel (0) target = $region53
    $region52: #{tpu_custom_call.1} parent=1 // pred_region
      %415 = dma.done [#allocation4], 128
    $region53: #{tpu_custom_call.1} parent=1 // pred_fallthru
      _
    %416 = vsyncpa [#allocation3], 1
    %417 = vsyncpa [#allocation6], 1
    %418 = vsyncpa [#allocation9], 1
    %419 = vsyncpa [#allocation4], 1

</llo_original>
